<compile_context>
chip_gen: v7x
topology: tpu7x:2x2x1
jax: 0.10.0
libtpu: 0.0.40
codegen_flags: <defaults>
</compile_context>

<pallas_src>
import functools
import math

import jax
import jax.numpy as jnp
from jax.experimental import pallas as pl
from jax.experimental.pallas import tpu as pltpu


IN_F = 9       # board-state features
H1 = 128
H2 = 128
H3_PAD = 128   # true hidden width 64, zero-padded to a full lane width
OUT_F = 9      # Q-values (output kept lane-narrow; no column padding)


def dqn_kernel(x_ref,
               w1_ref, b1_ref,
               w2_ref, b2_ref,
               w3_ref, b3_ref,
               w4_ref, b4_ref,
               o_ref, *, bf16_elementwise):
    wdt = w1_ref.dtype                     # bf16 weights -> bf16 MXU operands
    ew_dt = wdt if bf16_elementwise else jnp.float32

    def hidden(h, w_ref, b_ref):
        # bf16 x bf16 MXU with f32 accumulation; bias + ReLU in ew_dt.
        acc = jnp.dot(h, w_ref[...], preferred_element_type=jnp.float32)
        acc = acc.astype(ew_dt) + b_ref[...].astype(ew_dt)
        acc = jnp.maximum(acc, jnp.zeros((), ew_dt))
        return acc.astype(wdt)             # ready for the next MXU op

    h = x_ref[...].astype(wdt)
    h = hidden(h, w1_ref, b1_ref)          # fc1 + ReLU
    # dropout(p=0.5): eval-mode identity.
    # TODO(synk): training-mode stochastic dropout (pltpu.prng_*) not emitted.
    h = hidden(h, w2_ref, b2_ref)          # fc2 + ReLU
    h = hidden(h, w3_ref, b3_ref)          # fc3 + ReLU (cols 64..127 stay 0)
    # fc4, no activation; lane-narrow (tb, 9) f32 store.
    out = jnp.dot(h, w4_ref[...], preferred_element_type=jnp.float32) + b4_ref[...]
    o_ref[...] = out.astype(o_ref.dtype)


def _round_up(n, m):
    return ((n + m - 1) // m) * m


def _bf16_valu_available():
    """bf16 elementwise only pays off on chips with a bf16 VALU (v6e/v7x)."""
    try:
        kind = jax.devices()[0].device_kind.lower()
    except Exception:
        return True
    return not any(tag in kind for tag in ("v2", "v3", "v4", "v5"))


def dqn_forward(x, params, tile_b=2048, bf16_elementwise=None):
    """x: (B, 9) float32  ->  (B, 9) float32 Q-values."""
    B = x.shape[0]
    if bf16_elementwise is None:
        bf16_elementwise = _bf16_valu_available()

    tile_b = max(8, _round_up(tile_b, 8))
    if B >= 16:
        # >= 2 grid steps so both v7x TensorCores get a share of the batch.
        tb = min(tile_b, _round_up(pl.cdiv(B, 2), 8))
    else:
        tb = B                      # single block == full array dims (legal)
    grid = (pl.cdiv(B, tb),)        # ragged last tile is masked by Pallas

    weight_args = (params["w1"], params["b1"],
                   params["w2"], params["b2"],
                   params["w3"], params["b3"],
                   params["w4"], params["b4"])

    def resident(a):  # whole-array block, constant index map -> VMEM resident
        return pl.BlockSpec(a.shape, lambda i, nd=a.ndim: (0,) * nd)

    in_specs = ([pl.BlockSpec((tb, IN_F), lambda i: (i, 0))]
                + [resident(a) for a in weight_args])
    out_specs = pl.BlockSpec((tb, OUT_F), lambda i: (i, 0))

    flops = 2 * B * (IN_F * H1 + H1 * H2 + H2 * H3_PAD + H3_PAD * OUT_F)
    w_bytes = sum(int(a.size) * a.dtype.itemsize for a in weight_args)
    bytes_accessed = B * IN_F * 4 + B * OUT_F * 4 + w_bytes

    kernel = functools.partial(dqn_kernel,
                               bf16_elementwise=bool(bf16_elementwise))
    return pl.pallas_call(
        kernel,
        out_shape=jax.ShapeDtypeStruct((B, OUT_F), jnp.float32),
        grid=grid,
        in_specs=in_specs,
        out_specs=out_specs,
        compiler_params=pltpu.CompilerParams(
            dimension_semantics=("parallel",)),
        cost_estimate=pl.CostEstimate(
            flops=flops, transcendentals=0, bytes_accessed=bytes_accessed),
    )(x, *weight_args)


def init_params(key, weight_dtype=jnp.bfloat16):
    """PyTorch nn.Linear-style init (uniform +/- 1/sqrt(true fan_in)); weights
    stored as (in, out); hidden dims zero-padded to the lane width, the final
    output dim kept at 9 (lane-narrow); bf16 weights, f32 (1, out) biases."""
    layer_dims = [  # (fan_in, fan_out, padded_in, padded_out)
        (9, 128, 9, 128),
        (128, 128, 128, 128),
        (128, 64, 128, 128),
        (64, 9, 128, 9),
    ]
    params = {}
    for idx, (fi, fo, pi, po) in enumerate(layer_dims, start=1):
        key, kw, kb = jax.random.split(key, 3)
        bound = 1.0 / math.sqrt(fi)
        w = jax.random.uniform(kw, (fi, fo), jnp.float32, -bound, bound)
        b = jax.random.uniform(kb, (1, fo), jnp.float32, -bound, bound)
        params[f"w{idx}"] = jnp.pad(
            w, ((0, pi - fi), (0, po - fo))).astype(weight_dtype)
        params[f"b{idx}"] = jnp.pad(b, ((0, 0), (0, po - fo)))
    return params


def dqn_reference(x, p, bf16_elementwise=True):
    """Pure-JAX mirror of the kernel math (bf16 MXU operands, f32 accumulation,
    bias/ReLU in the same elementwise dtype as the kernel)."""
    wdt = p["w1"].dtype
    ew_dt = wdt if bf16_elementwise else jnp.float32

    def hidden(h, w, b):
        acc = jnp.dot(h.astype(wdt).astype(jnp.float32), w.astype(jnp.float32),
                      precision=jax.lax.Precision.HIGHEST)
        acc = acc.astype(ew_dt) + b.astype(ew_dt)
        return jnp.maximum(acc, jnp.zeros((), ew_dt))

    h = hidden(x, p["w1"], p["b1"])
    h = hidden(h, p["w2"], p["b2"])
    h = hidden(h, p["w3"], p["b3"])
    out = jnp.dot(h.astype(wdt).astype(jnp.float32),
                  p["w4"].astype(jnp.float32),
                  precision=jax.lax.Precision.HIGHEST) + p["b4"]
    return out


if __name__ == "__main__":
    key = jax.random.PRNGKey(0)
    key, kx = jax.random.split(key)
    params = init_params(key)
    use_bf16_ew = _bf16_valu_available()

    # Small batch consistent with the module (9-dim board state per row).
    B = 8
    x = jax.random.normal(kx, (B, IN_F), jnp.float32)
    out = jax.block_until_ready(
        dqn_forward(x, params, bf16_elementwise=use_bf16_ew))
    ref = dqn_reference(x, params, bf16_elementwise=use_bf16_ew)
    assert out.shape == (B, OUT_F)
    assert jnp.allclose(out, ref, atol=2e-2, rtol=2e-2), "mismatch vs reference"

    # Exercise the multi-tile grid + ragged last tile path (300 % 128 != 0).
    B2 = 300
    x2 = jax.random.normal(kx, (B2, IN_F), jnp.float32)
    out2 = jax.block_until_ready(
        dqn_forward(x2, params, tile_b=128, bf16_elementwise=use_bf16_ew))
    ref2 = dqn_reference(x2, params, bf16_elementwise=use_bf16_ew)
    assert out2.shape == (B2, OUT_F)
    assert jnp.allclose(out2, ref2, atol=2e-2, rtol=2e-2), "mismatch (tiled path)"

    print("KERNEL_OK")
</pallas_src>

<mosaic_0001>
module attributes {stable_mosaic.version = 11 : i64} {
  func.func @dqn_kernel(%arg0: i32, %arg1: memref<8x9xf32, #tpu.memory_space<vmem>>, %arg2: memref<9x128xbf16, #tpu.memory_space<vmem>>, %arg3: memref<1x128xf32, #tpu.memory_space<vmem>>, %arg4: memref<128x128xbf16, #tpu.memory_space<vmem>>, %arg5: memref<1x128xf32, #tpu.memory_space<vmem>>, %arg6: memref<128x128xbf16, #tpu.memory_space<vmem>>, %arg7: memref<1x128xf32, #tpu.memory_space<vmem>>, %arg8: memref<128x9xbf16, #tpu.memory_space<vmem>>, %arg9: memref<1x9xf32, #tpu.memory_space<vmem>>, %arg10: memref<8x9xf32, #tpu.memory_space<vmem>>) attributes {dimension_semantics = [#tpu.dimension_semantics<parallel>], iteration_bounds = array<i64: 1>, scalar_prefetch = 0 : i64, scratch_operands = 0 : i64, tpu.core_type = #tpu.core_type<tc>, window_params = [{transform_indices = @transform_0, window_bounds = array<i64: 8, 9>}, {pipeline_mode = #tpu.pipeline_mode<synchronous>, transform_indices = @transform_1, window_bounds = array<i64: 9, 128>}, {pipeline_mode = #tpu.pipeline_mode<synchronous>, transform_indices = @transform_2, window_bounds = array<i64: 1, 128>}, {pipeline_mode = #tpu.pipeline_mode<synchronous>, transform_indices = @transform_3, window_bounds = array<i64: 128, 128>}, {pipeline_mode = #tpu.pipeline_mode<synchronous>, transform_indices = @transform_4, window_bounds = array<i64: 1, 128>}, {pipeline_mode = #tpu.pipeline_mode<synchronous>, transform_indices = @transform_5, window_bounds = array<i64: 128, 128>}, {pipeline_mode = #tpu.pipeline_mode<synchronous>, transform_indices = @transform_6, window_bounds = array<i64: 1, 128>}, {pipeline_mode = #tpu.pipeline_mode<synchronous>, transform_indices = @transform_7, window_bounds = array<i64: 128, 9>}, {pipeline_mode = #tpu.pipeline_mode<synchronous>, transform_indices = @transform_8, window_bounds = array<i64: 1, 9>}, {transform_indices = @transform_9, window_bounds = array<i64: 8, 9>}]} {
    %c0 = arith.constant 0 : index
    %c0_0 = arith.constant 0 : index
    %0 = vector.load %arg1[%c0, %c0_0] : memref<8x9xf32, #tpu.memory_space<vmem>>, vector<8x9xf32>
    %1 = arith.truncf %0 : vector<8x9xf32> to vector<8x9xbf16>
    %c0_1 = arith.constant 0 : index
    %c0_2 = arith.constant 0 : index
    %2 = vector.load %arg2[%c0_1, %c0_2] : memref<9x128xbf16, #tpu.memory_space<vmem>>, vector<9x128xbf16>
    %cst = arith.constant dense<0.000000e+00> : vector<8x128xf32>
    %3 = tpu.matmul %1, %2, %cst {dimension_numbers = #tpu.dot_dimension_numbers<[1], [0], [0], [1], [0, 0, 1, 1], [], []>} : vector<8x9xbf16>, vector<9x128xbf16>, vector<8x128xf32> -> vector<8x128xf32>
    %4 = arith.truncf %3 : vector<8x128xf32> to vector<8x128xbf16>
    %c0_3 = arith.constant 0 : index
    %c0_4 = arith.constant 0 : index
    %5 = vector.load %arg3[%c0_3, %c0_4] : memref<1x128xf32, #tpu.memory_space<vmem>>, vector<1x128xf32>
    %6 = arith.truncf %5 : vector<1x128xf32> to vector<1x128xbf16>
    %7 = vector.broadcast %6 : vector<1x128xbf16> to vector<8x128xbf16>
    %8 = arith.addf %4, %7 : vector<8x128xbf16>
    %cst_5 = arith.constant 0.000000e+00 : bf16
    %9 = vector.broadcast %cst_5 : bf16 to vector<8x128xbf16>
    %10 = arith.maximumf %8, %9 : vector<8x128xbf16>
    %c0_6 = arith.constant 0 : index
    %c0_7 = arith.constant 0 : index
    %11 = vector.load %arg4[%c0_6, %c0_7] : memref<128x128xbf16, #tpu.memory_space<vmem>>, vector<128x128xbf16>
    %cst_8 = arith.constant dense<0.000000e+00> : vector<8x128xf32>
    %12 = tpu.matmul %10, %11, %cst_8 {dimension_numbers = #tpu.dot_dimension_numbers<[1], [0], [0], [1], [0, 0, 1, 1], [], []>} : vector<8x128xbf16>, vector<128x128xbf16>, vector<8x128xf32> -> vector<8x128xf32>
    %13 = arith.truncf %12 : vector<8x128xf32> to vector<8x128xbf16>
    %c0_9 = arith.constant 0 : index
    %c0_10 = arith.constant 0 : index
    %14 = vector.load %arg5[%c0_9, %c0_10] : memref<1x128xf32, #tpu.memory_space<vmem>>, vector<1x128xf32>
    %15 = arith.truncf %14 : vector<1x128xf32> to vector<1x128xbf16>
    %16 = vector.broadcast %15 : vector<1x128xbf16> to vector<8x128xbf16>
    %17 = arith.addf %13, %16 : vector<8x128xbf16>
    %cst_11 = arith.constant 0.000000e+00 : bf16
    %18 = vector.broadcast %cst_11 : bf16 to vector<8x128xbf16>
    %19 = arith.maximumf %17, %18 : vector<8x128xbf16>
    %c0_12 = arith.constant 0 : index
    %c0_13 = arith.constant 0 : index
    %20 = vector.load %arg6[%c0_12, %c0_13] : memref<128x128xbf16, #tpu.memory_space<vmem>>, vector<128x128xbf16>
    %cst_14 = arith.constant dense<0.000000e+00> : vector<8x128xf32>
    %21 = tpu.matmul %19, %20, %cst_14 {dimension_numbers = #tpu.dot_dimension_numbers<[1], [0], [0], [1], [0, 0, 1, 1], [], []>} : vector<8x128xbf16>, vector<128x128xbf16>, vector<8x128xf32> -> vector<8x128xf32>
    %22 = arith.truncf %21 : vector<8x128xf32> to vector<8x128xbf16>
    %c0_15 = arith.constant 0 : index
    %c0_16 = arith.constant 0 : index
    %23 = vector.load %arg7[%c0_15, %c0_16] : memref<1x128xf32, #tpu.memory_space<vmem>>, vector<1x128xf32>
    %24 = arith.truncf %23 : vector<1x128xf32> to vector<1x128xbf16>
    %25 = vector.broadcast %24 : vector<1x128xbf16> to vector<8x128xbf16>
    %26 = arith.addf %22, %25 : vector<8x128xbf16>
    %cst_17 = arith.constant 0.000000e+00 : bf16
    %27 = vector.broadcast %cst_17 : bf16 to vector<8x128xbf16>
    %28 = arith.maximumf %26, %27 : vector<8x128xbf16>
    %c0_18 = arith.constant 0 : index
    %c0_19 = arith.constant 0 : index
    %29 = vector.load %arg8[%c0_18, %c0_19] : memref<128x9xbf16, #tpu.memory_space<vmem>>, vector<128x9xbf16>
    %cst_20 = arith.constant dense<0.000000e+00> : vector<8x9xf32>
    %30 = tpu.matmul %28, %29, %cst_20 {dimension_numbers = #tpu.dot_dimension_numbers<[1], [0], [0], [1], [0, 0, 1, 1], [], []>} : vector<8x128xbf16>, vector<128x9xbf16>, vector<8x9xf32> -> vector<8x9xf32>
    %c0_21 = arith.constant 0 : index
    %c0_22 = arith.constant 0 : index
    %31 = vector.load %arg9[%c0_21, %c0_22] : memref<1x9xf32, #tpu.memory_space<vmem>>, vector<1x9xf32>
    %32 = vector.broadcast %31 : vector<1x9xf32> to vector<8x9xf32>
    %33 = arith.addf %30, %32 : vector<8x9xf32>
    %c0_23 = arith.constant 0 : index
    %c0_24 = arith.constant 0 : index
    %34 = vector.load %arg10[%c0_23, %c0_24] : memref<8x9xf32, #tpu.memory_space<vmem>>, vector<8x9xf32>
    tpu.vector_store %arg10[%c0_23, %c0_24], %33 {strides = array<i32>} : memref<8x9xf32, #tpu.memory_space<vmem>>, vector<8x9xf32>,
    return
  }
  func.func @transform_0(%arg0: i32) -> (i32, i32) {
    %c0_i32 = arith.constant 0 : i32
    %c0_i32_0 = arith.constant 0 : i32
    return %arg0, %c0_i32 : i32, i32
  }
  func.func @transform_1(%arg0: i32) -> (i32, i32) {
    %c0_i32 = arith.constant 0 : i32
    %c0_i32_0 = arith.constant 0 : i32
    %c0_i32_1 = arith.constant 0 : i32
    return %c0_i32, %c0_i32_0 : i32, i32
  }
  func.func @transform_2(%arg0: i32) -> (i32, i32) {
    %c0_i32 = arith.constant 0 : i32
    %c0_i32_0 = arith.constant 0 : i32
    %c0_i32_1 = arith.constant 0 : i32
    return %c0_i32, %c0_i32_0 : i32, i32
  }
  func.func @transform_3(%arg0: i32) -> (i32, i32) {
    %c0_i32 = arith.constant 0 : i32
    %c0_i32_0 = arith.constant 0 : i32
    %c0_i32_1 = arith.constant 0 : i32
    return %c0_i32, %c0_i32_0 : i32, i32
  }
  func.func @transform_4(%arg0: i32) -> (i32, i32) {
    %c0_i32 = arith.constant 0 : i32
    %c0_i32_0 = arith.constant 0 : i32
    %c0_i32_1 = arith.constant 0 : i32
    return %c0_i32, %c0_i32_0 : i32, i32
  }
  func.func @transform_5(%arg0: i32) -> (i32, i32) {
    %c0_i32 = arith.constant 0 : i32
    %c0_i32_0 = arith.constant 0 : i32
    %c0_i32_1 = arith.constant 0 : i32
    return %c0_i32, %c0_i32_0 : i32, i32
  }
  func.func @transform_6(%arg0: i32) -> (i32, i32) {
    %c0_i32 = arith.constant 0 : i32
    %c0_i32_0 = arith.constant 0 : i32
    %c0_i32_1 = arith.constant 0 : i32
    return %c0_i32, %c0_i32_0 : i32, i32
  }
  func.func @transform_7(%arg0: i32) -> (i32, i32) {
    %c0_i32 = arith.constant 0 : i32
    %c0_i32_0 = arith.constant 0 : i32
    %c0_i32_1 = arith.constant 0 : i32
    return %c0_i32, %c0_i32_0 : i32, i32
  }
  func.func @transform_8(%arg0: i32) -> (i32, i32) {
    %c0_i32 = arith.constant 0 : i32
    %c0_i32_0 = arith.constant 0 : i32
    %c0_i32_1 = arith.constant 0 : i32
    return %c0_i32, %c0_i32_0 : i32, i32
  }
  func.func @transform_9(%arg0: i32) -> (i32, i32) {
    %c0_i32 = arith.constant 0 : i32
    %c0_i32_0 = arith.constant 0 : i32
    return %arg0, %c0_i32 : i32, i32
  }
}

</mosaic_0001>

<llo_original>
// kernel: tpu_custom_call.1
$region0: #{tpu_custom_call.1}
  #allocation0 [shape = 'u32[]', space=smem, size = 0x4, offset = 0x4, fixed_abs, tag = 'smem constant byte address 0x4 - core index']
  #allocation1 [shape = 'u32[144,128]{1,0:T(1,128)}', space=vmem, size = 0x12000, scoped, tag = 'internal scratch']
  %s0 = inlined_call_operand.vmem [shape: f32[8,9], index: 0, kind: input, shape index: {}]
  %s1 = inlined_call_operand.vmem [shape: bf16[9,128], index: 1, kind: input, shape index: {}]
  %s2 = inlined_call_operand.vmem [shape: f32[1,128], index: 2, kind: input, shape index: {}]
  %s3 = inlined_call_operand.vmem [shape: bf16[128,128], index: 3, kind: input, shape index: {}]
  %s4 = inlined_call_operand.vmem [shape: f32[1,128], index: 4, kind: input, shape index: {}]
  %s5 = inlined_call_operand.hbm [shape: bf16[128,128], index: 5, kind: input, shape index: {}]
  %s6 = inlined_call_operand.vmem [shape: f32[1,128], index: 6, kind: input, shape index: {}]
  %s7 = inlined_call_operand.vmem [shape: bf16[128,9], index: 7, kind: input, shape index: {}]
  %s8 = inlined_call_operand.vmem [shape: f32[1,9], index: 8, kind: input, shape index: {}]
  %s9 = inlined_call_operand.hbm [shape: f32[8,9], index: 9, kind: output, shape index: {}]
  %s10 = sld [smem:[#allocation0]]
  $region50: #{tpu_custom_call.1} parent=0
    _
  %s12 = ssub.s32 1, %s10
  %s13 = scalar_select 0, %s12, %s10
  $region1: #{tpu_custom_call.1} parent=0
    #allocation2 [shape = 'u8[32768]{0}', space=vmem, size = 0x8000, scoped, tag = 'input window, operand 5, single buffered']
    #allocation3 [shape = 's32[1]{0}', space=sflag, size = 0x4, scoped, tag = 'scoped memory for tpu_custom_call.1']
    #allocation4 [shape = 's32[1]{0}', space=sflag, size = 0x4, scoped, tag = 'scoped memory for tpu_custom_call.1']
    #allocation5 [shape = 'u8[4096]{0}', space=vmem, size = 0x1000, scoped, tag = 'output window, operand 0, single buffered']
    %14 = vsyncpa [#allocation3], 0
    %15 = vsyncpa [#allocation4], 0
    // Predicated region
    $region2: #{tpu_custom_call.1} parent=1 // pred_check
      _
    $region3: #{tpu_custom_call.1} parent=1 // pred_check_branch
      %17 = sbr.rel (0) target = $region5
    $region4: #{tpu_custom_call.1} parent=1 // pred_region
      _
    $region5: #{tpu_custom_call.1} parent=1 // pred_fallthru
      _
    // Predicated region
    $region6: #{tpu_custom_call.1} parent=1 // pred_check
      _
    $region7: #{tpu_custom_call.1} parent=1 // pred_check_branch
      %19 = sbr.rel (0) target = $region9
    $region8: #{tpu_custom_call.1} parent=1 // pred_region
      _
    $region9: #{tpu_custom_call.1} parent=1 // pred_fallthru
      _
    // Predicated region
    $region10: #{tpu_custom_call.1} parent=1 // pred_check
      _
    $region11: #{tpu_custom_call.1} parent=1 // pred_check_branch
      %21 = sbr.rel (0) target = $region13
    $region12: #{tpu_custom_call.1} parent=1 // pred_region
      _
    $region13: #{tpu_custom_call.1} parent=1 // pred_fallthru
      _
    // Predicated region
    $region14: #{tpu_custom_call.1} parent=1 // pred_check
      _
    $region15: #{tpu_custom_call.1} parent=1 // pred_check_branch
      %23 = sbr.rel (0) target = $region17
    $region16: #{tpu_custom_call.1} parent=1 // pred_region
      _
    $region17: #{tpu_custom_call.1} parent=1 // pred_fallthru
      _
    // Predicated region
    $region18: #{tpu_custom_call.1} parent=1 // pred_check
      _
    $region19: #{tpu_custom_call.1} parent=1 // pred_check_branch
      %25 = sbr.rel (0) target = $region21
    $region20: #{tpu_custom_call.1} parent=1 // pred_region
      _
    $region21: #{tpu_custom_call.1} parent=1 // pred_fallthru
      _
    // Predicated region
    $region22: #{tpu_custom_call.1} parent=1 // pred_check
      _
    $region23: #{tpu_custom_call.1} parent=1 // pred_check_branch
      %27 = sbr.rel (0) target = $region25
    $region24: #{tpu_custom_call.1} parent=1 // pred_region
      %s29 = ssub.s32 1024, 1024
      %30 = vsyncadd [#allocation3], %s29
      %s31 = sshll.u32 [#allocation2], 4
      %s32 = int_to_ptr.vmem [resolvable:$true] %s31
      %37 = dma.hbm_to_vmem [thread:$0]  %s5, 1024, %s32, [#allocation3], 64, 64, 4
    $region25: #{tpu_custom_call.1} parent=1 // pred_fallthru
      _
    // Predicated region
    $region26: #{tpu_custom_call.1} parent=1 // pred_check
      _
    $region27: #{tpu_custom_call.1} parent=1 // pred_check_branch
      %39 = sbr.rel (0) target = $region29
    $region28: #{tpu_custom_call.1} parent=1 // pred_region
      _
    $region29: #{tpu_custom_call.1} parent=1 // pred_fallthru
      _
    // Predicated region
    $region30: #{tpu_custom_call.1} parent=1 // pred_check
      _
    $region31: #{tpu_custom_call.1} parent=1 // pred_check_branch
      %41 = sbr.rel (0) target = $region33
    $region32: #{tpu_custom_call.1} parent=1 // pred_region
      _
    $region33: #{tpu_custom_call.1} parent=1 // pred_fallthru
      _
    // Predicated region
    $region34: #{tpu_custom_call.1} parent=1 // pred_check
      _
    $region35: #{tpu_custom_call.1} parent=1 // pred_check_branch
      %43 = sbr.rel (0) target = $region37
    $region36: #{tpu_custom_call.1} parent=1 // pred_region
      _
    $region37: #{tpu_custom_call.1} parent=1 // pred_fallthru
      _
    // Predicated region
    $region38: #{tpu_custom_call.1} parent=1 // pred_check
      _
    $region39: #{tpu_custom_call.1} parent=1 // pred_check_branch
      %45 = sbr.rel (0) target = $region41
    $region40: #{tpu_custom_call.1} parent=1 // pred_region
      %46 = dma.done [#allocation3], 1024
    $region41: #{tpu_custom_call.1} parent=1 // pred_fallthru
      _
    %v48 = vld [vmem:[%s0] sm:$0xff]
    %v49 = vpack.c.bf16 %v48, %v48
    %v50 = vld [vmem:[%s1] sm:$0xf]
    %v51 = vld [vmem:[%s1 + $0x4] sm:$0x1]
    %v54 = vunpack.c.l.b16 %v50
    %v55 = vunpack.c.l.b16 %v51
    %v56 = vpack.c.b16 %v55, %v54
    %vm57 = vcmask 72704
    %v59 = vsel %vm57, %v49, 0
    %vm61 = vcmask 1043456
    %vm62 = vcmask 1044480
    %v63 = vsel %vm61, 4294967295, 65535
    %v64 = vsel %vm62, %v63, 0
    %v66 = vand.u32 %v56, %v64
    %68 = vmatprep.subr.bf16.mxu0 0
    %69 = vmatpush1.bf16.msra.mxu0 %v66
    %70 = vmatprep.subr.bf16.mxu0 0
    %71 = vmatpush1.bf16.msra.mxu0 0
    %72 = vmatprep.subr.bf16.mxu0 0
    %73 = vmatpush1.bf16.msra.mxu0 0
    %74 = vmatprep.subr.bf16.mxu0 0
    %75 = vmatpush1.bf16.msra.mxu0 0
    %76 = vmatprep.subr.bf16.mxu0 0
    %77 = vmatpush1.bf16.msra.mxu0 0
    %78 = vmatprep.subr.bf16.mxu0 0
    %79 = vmatpush1.bf16.msra.mxu0 0
    %80 = vmatprep.subr.bf16.mxu0 0
    %81 = vmatpush1.bf16.msra.mxu0 0
    %82 = vmatprep.subr.bf16.mxu0 0
    %83 = vmatpush1.bf16.msra.mxu0 0
    %84 = vmatprep.subr.bf16.mxu0 0
    %85 = vmatpush1.bf16.msra.mxu0 0
    %86 = vmatprep.subr.bf16.mxu0 0
    %87 = vmatpush1.bf16.msra.mxu0 0
    %88 = vmatprep.subr.bf16.mxu0 0
    %89 = vmatpush1.bf16.msra.mxu0 0
    %90 = vmatprep.subr.bf16.mxu0 0
    %91 = vmatpush1.bf16.msra.mxu0 0
    %92 = vmatprep.subr.bf16.mxu0 0
    %93 = vmatpush1.bf16.msra.mxu0 0
    %94 = vmatprep.subr.bf16.mxu0 0
    %95 = vmatpush1.bf16.msra.mxu0 0
    %96 = vmatprep.subr.bf16.mxu0 0
    %97 = vmatpush1.bf16.msra.mxu0 0
    %98 = vmatprep.subr.bf16.mxu0 0
    %99 = vmatpush1.bf16.msra.mxu0 0
    %100 = vmatprep.mubr.bf16.mxu0 0
    %101 = vmatmul.mubr.bf16.gmra.mrb[0].mxu0 %v59
    %v102 = vpop.f32.mrb[0].mxu0
    %v103 = vadd.f32 0.0, %v102
    %v104 = vpop.f32.mrb[0].mxu0
    %v105 = vpop.f32.mrb[0].mxu0
    %v106 = vpop.f32.mrb[0].mxu0
    %107 = vdwg.mxu0
    %v108 = vpack.c.bf16 %v103, %v103
    %v109 = vld [vmem:[%s2] sm:$0x1]
    %v110 = vpack.c.bf16 %v109, %v109
    %v112 = vpack.i.b16 %v110, %v110
    %v114 = vlaneseq
    %v115 = vshrl.u32 %v114, 7
    %v116 = vsub.s32 0, %v115
    %v117 = vrot.slane %v112, %v116
    %v118 = vadd.bf16 %v108, %v117
    %v119 = vmax.bf16 %v118, 0
    %v120 = vld [vmem:[%s3] sm:$0xf]
    %v121 = vld [vmem:[%s3 + $0x4] sm:$0xf]
    %v122 = vld [vmem:[%s3 + $0x8] sm:$0xf]
    %v123 = vld [vmem:[%s3 + $0xc] sm:$0xf]
    %v124 = vld [vmem:[%s3 + $0x10] sm:$0xf]
    %v125 = vld [vmem:[%s3 + $0x14] sm:$0xf]
    %v126 = vld [vmem:[%s3 + $0x18] sm:$0xf]
    %v127 = vld [vmem:[%s3 + $0x1c] sm:$0xf]
    %v128 = vld [vmem:[%s3 + $0x20] sm:$0xf]
    %v129 = vld [vmem:[%s3 + $0x24] sm:$0xf]
    %v130 = vld [vmem:[%s3 + $0x28] sm:$0xf]
    %v131 = vld [vmem:[%s3 + $0x2c] sm:$0xf]
    %v132 = vld [vmem:[%s3 + $0x30] sm:$0xf]
    %v133 = vld [vmem:[%s3 + $0x34] sm:$0xf]
    %v134 = vld [vmem:[%s3 + $0x38] sm:$0xf]
    %v135 = vld [vmem:[%s3 + $0x3c] sm:$0xf]
    %v152 = vunpack.c.l.b16 %v120
    %v153 = vunpack.c.l.b16 %v121
    %v154 = vunpack.c.l.b16 %v122
    %v155 = vunpack.c.l.b16 %v123
    %v156 = vunpack.c.l.b16 %v124
    %v157 = vunpack.c.l.b16 %v125
    %v158 = vunpack.c.l.b16 %v126
    %v159 = vunpack.c.l.b16 %v127
    %v160 = vunpack.c.l.b16 %v128
    %v161 = vunpack.c.l.b16 %v129
    %v162 = vunpack.c.l.b16 %v130
    %v163 = vunpack.c.l.b16 %v131
    %v164 = vunpack.c.l.b16 %v132
    %v165 = vunpack.c.l.b16 %v133
    %v166 = vunpack.c.l.b16 %v134
    %v167 = vunpack.c.l.b16 %v135
    %v168 = vpack.c.b16 %v153, %v152
    %v169 = vpack.c.b16 %v155, %v154
    %v170 = vpack.c.b16 %v157, %v156
    %v171 = vpack.c.b16 %v159, %v158
    %v172 = vpack.c.b16 %v161, %v160
    %v173 = vpack.c.b16 %v163, %v162
    %v174 = vpack.c.b16 %v165, %v164
    %v175 = vpack.c.b16 %v167, %v166
    %184 = vmatprep.subr.bf16.mxu0 0
    %185 = vmatpush1.bf16.msra.mxu0 %v168
    %186 = vmatprep.subr.bf16.mxu0 0
    %187 = vmatpush1.bf16.msra.mxu0 %v169
    %188 = vmatprep.subr.bf16.mxu0 0
    %189 = vmatpush1.bf16.msra.mxu0 %v170
    %190 = vmatprep.subr.bf16.mxu0 0
    %191 = vmatpush1.bf16.msra.mxu0 %v171
    %192 = vmatprep.subr.bf16.mxu0 0
    %193 = vmatpush1.bf16.msra.mxu0 %v172
    %194 = vmatprep.subr.bf16.mxu0 0
    %195 = vmatpush1.bf16.msra.mxu0 %v173
    %196 = vmatprep.subr.bf16.mxu0 0
    %197 = vmatpush1.bf16.msra.mxu0 %v174
    %198 = vmatprep.subr.bf16.mxu0 0
    %199 = vmatpush1.bf16.msra.mxu0 %v175
    %200 = vmatprep.subr.bf16.mxu0 0
    %201 = vmatpush1.bf16.msra.mxu0 0
    %202 = vmatprep.subr.bf16.mxu0 0
    %203 = vmatpush1.bf16.msra.mxu0 0
    %204 = vmatprep.subr.bf16.mxu0 0
    %205 = vmatpush1.bf16.msra.mxu0 0
    %206 = vmatprep.subr.bf16.mxu0 0
    %207 = vmatpush1.bf16.msra.mxu0 0
    %208 = vmatprep.subr.bf16.mxu0 0
    %209 = vmatpush1.bf16.msra.mxu0 0
    %210 = vmatprep.subr.bf16.mxu0 0
    %211 = vmatpush1.bf16.msra.mxu0 0
    %212 = vmatprep.subr.bf16.mxu0 0
    %213 = vmatpush1.bf16.msra.mxu0 0
    %214 = vmatprep.subr.bf16.mxu0 0
    %215 = vmatpush1.bf16.msra.mxu0 0
    %216 = vmatprep.mubr.bf16.mxu0 0
    %217 = vmatmul.mubr.bf16.gmra.mrb[0].mxu0 %v119
    %v218 = vpop.f32.mrb[0].mxu0
    %v219 = vadd.f32 0.0, %v218
    %v220 = vpop.f32.mrb[0].mxu0
    %v221 = vpop.f32.mrb[0].mxu0
    %v222 = vpop.f32.mrb[0].mxu0
    %223 = vdwg.mxu0
    %v224 = vpack.c.bf16 %v219, %v219
    %v225 = vld [vmem:[%s4] sm:$0x1]
    %v226 = vpack.c.bf16 %v225, %v225
    %v228 = vpack.i.b16 %v226, %v226
    %v230 = vlaneseq
    %v231 = vshrl.u32 %v230, 7
    %v232 = vsub.s32 0, %v231
    %v233 = vrot.slane %v228, %v232
    %v234 = vadd.bf16 %v224, %v233
    %v235 = vmax.bf16 %v234, 0
    %v236 = vld [vmem:[#allocation2] sm:$0xf]
    %v237 = vld [vmem:[#allocation2 + $0x4] sm:$0xf]
    %v238 = vld [vmem:[#allocation2 + $0x8] sm:$0xf]
    %v239 = vld [vmem:[#allocation2 + $0xc] sm:$0xf]
    %v240 = vld [vmem:[#allocation2 + $0x10] sm:$0xf]
    %v241 = vld [vmem:[#allocation2 + $0x14] sm:$0xf]
    %v242 = vld [vmem:[#allocation2 + $0x18] sm:$0xf]
    %v243 = vld [vmem:[#allocation2 + $0x1c] sm:$0xf]
    %v244 = vld [vmem:[#allocation2 + $0x20] sm:$0xf]
    %v245 = vld [vmem:[#allocation2 + $0x24] sm:$0xf]
    %v246 = vld [vmem:[#allocation2 + $0x28] sm:$0xf]
    %v247 = vld [vmem:[#allocation2 + $0x2c] sm:$0xf]
    %v248 = vld [vmem:[#allocation2 + $0x30] sm:$0xf]
    %v249 = vld [vmem:[#allocation2 + $0x34] sm:$0xf]
    %v250 = vld [vmem:[#allocation2 + $0x38] sm:$0xf]
    %v251 = vld [vmem:[#allocation2 + $0x3c] sm:$0xf]
    %v268 = vunpack.c.l.b16 %v236
    %v269 = vunpack.c.l.b16 %v237
    %v270 = vunpack.c.l.b16 %v238
    %v271 = vunpack.c.l.b16 %v239
    %v272 = vunpack.c.l.b16 %v240
    %v273 = vunpack.c.l.b16 %v241
    %v274 = vunpack.c.l.b16 %v242
    %v275 = vunpack.c.l.b16 %v243
    %v276 = vunpack.c.l.b16 %v244
    %v277 = vunpack.c.l.b16 %v245
    %v278 = vunpack.c.l.b16 %v246
    %v279 = vunpack.c.l.b16 %v247
    %v280 = vunpack.c.l.b16 %v248
    %v281 = vunpack.c.l.b16 %v249
    %v282 = vunpack.c.l.b16 %v250
    %v283 = vunpack.c.l.b16 %v251
    %v284 = vpack.c.b16 %v269, %v268
    %v285 = vpack.c.b16 %v271, %v270
    %v286 = vpack.c.b16 %v273, %v272
    %v287 = vpack.c.b16 %v275, %v274
    %v288 = vpack.c.b16 %v277, %v276
    %v289 = vpack.c.b16 %v279, %v278
    %v290 = vpack.c.b16 %v281, %v280
    %v291 = vpack.c.b16 %v283, %v282
    %300 = vmatprep.subr.bf16.mxu0 0
    %301 = vmatpush1.bf16.msra.mxu0 %v284
    %302 = vmatprep.subr.bf16.mxu0 0
    %303 = vmatpush1.bf16.msra.mxu0 %v285
    %304 = vmatprep.subr.bf16.mxu0 0
    %305 = vmatpush1.bf16.msra.mxu0 %v286
    %306 = vmatprep.subr.bf16.mxu0 0
    %307 = vmatpush1.bf16.msra.mxu0 %v287
    %308 = vmatprep.subr.bf16.mxu0 0
    %309 = vmatpush1.bf16.msra.mxu0 %v288
    %310 = vmatprep.subr.bf16.mxu0 0
    %311 = vmatpush1.bf16.msra.mxu0 %v289
    %312 = vmatprep.subr.bf16.mxu0 0
    %313 = vmatpush1.bf16.msra.mxu0 %v290
    %314 = vmatprep.subr.bf16.mxu0 0
    %315 = vmatpush1.bf16.msra.mxu0 %v291
    %316 = vmatprep.subr.bf16.mxu0 0
    %317 = vmatpush1.bf16.msra.mxu0 0
    %318 = vmatprep.subr.bf16.mxu0 0
    %319 = vmatpush1.bf16.msra.mxu0 0
    %320 = vmatprep.subr.bf16.mxu0 0
    %321 = vmatpush1.bf16.msra.mxu0 0
    %322 = vmatprep.subr.bf16.mxu0 0
    %323 = vmatpush1.bf16.msra.mxu0 0
    %324 = vmatprep.subr.bf16.mxu0 0
    %325 = vmatpush1.bf16.msra.mxu0 0
    %326 = vmatprep.subr.bf16.mxu0 0
    %327 = vmatpush1.bf16.msra.mxu0 0
    %328 = vmatprep.subr.bf16.mxu0 0
    %329 = vmatpush1.bf16.msra.mxu0 0
    %330 = vmatprep.subr.bf16.mxu0 0
    %331 = vmatpush1.bf16.msra.mxu0 0
    %332 = vmatprep.mubr.bf16.mxu0 0
    %333 = vmatmul.mubr.bf16.gmra.mrb[0].mxu0 %v235
    %v334 = vpop.f32.mrb[0].mxu0
    %v335 = vadd.f32 0.0, %v334
    %v336 = vpop.f32.mrb[0].mxu0
    %v337 = vpop.f32.mrb[0].mxu0
    %v338 = vpop.f32.mrb[0].mxu0
    %339 = vdwg.mxu0
    %v340 = vpack.c.bf16 %v335, %v335
    %v341 = vld [vmem:[%s6] sm:$0x1]
    %v342 = vpack.c.bf16 %v341, %v341
    %v344 = vpack.i.b16 %v342, %v342
    %v346 = vlaneseq
    %v347 = vshrl.u32 %v346, 7
    %v348 = vsub.s32 0, %v347
    %v349 = vrot.slane %v344, %v348
    %v350 = vadd.bf16 %v340, %v349
    %v351 = vmax.bf16 %v350, 0
    %v352 = vld [vmem:[%s7] sm:$0xf]
    %v353 = vld [vmem:[%s7 + $0x4] sm:$0xf]
    %v354 = vld [vmem:[%s7 + $0x8] sm:$0xf]
    %v355 = vld [vmem:[%s7 + $0xc] sm:$0xf]
    %v356 = vld [vmem:[%s7 + $0x10] sm:$0xf]
    %v357 = vld [vmem:[%s7 + $0x14] sm:$0xf]
    %v358 = vld [vmem:[%s7 + $0x18] sm:$0xf]
    %v359 = vld [vmem:[%s7 + $0x1c] sm:$0xf]
    %v360 = vld [vmem:[%s7 + $0x20] sm:$0xf]
    %v361 = vld [vmem:[%s7 + $0x24] sm:$0xf]
    %v362 = vld [vmem:[%s7 + $0x28] sm:$0xf]
    %v363 = vld [vmem:[%s7 + $0x2c] sm:$0xf]
    %v364 = vld [vmem:[%s7 + $0x30] sm:$0xf]
    %v365 = vld [vmem:[%s7 + $0x34] sm:$0xf]
    %v366 = vld [vmem:[%s7 + $0x38] sm:$0xf]
    %v367 = vld [vmem:[%s7 + $0x3c] sm:$0xf]
    %v368 = vld [vmem:[%s8] sm:$0x1]
    %v370 = vlaneseq
    %v371 = vshrl.u32 %v370, 7
    %v372 = vsub.s32 0, %v371
    %v373 = vrot.slane %v368, %v372
    %v391 = vunpack.c.l.b16 %v352
    %v392 = vunpack.c.l.b16 %v353
    %v393 = vunpack.c.l.b16 %v354
    %v394 = vunpack.c.l.b16 %v355
    %v395 = vunpack.c.l.b16 %v356
    %v396 = vunpack.c.l.b16 %v357
    %v397 = vunpack.c.l.b16 %v358
    %v398 = vunpack.c.l.b16 %v359
    %v399 = vunpack.c.l.b16 %v360
    %v400 = vunpack.c.l.b16 %v361
    %v401 = vunpack.c.l.b16 %v362
    %v402 = vunpack.c.l.b16 %v363
    %v403 = vunpack.c.l.b16 %v364
    %v404 = vunpack.c.l.b16 %v365
    %v405 = vunpack.c.l.b16 %v366
    %v406 = vunpack.c.l.b16 %v367
    %v407 = vpack.c.b16 %v392, %v391
    %v408 = vpack.c.b16 %v394, %v393
    %v409 = vpack.c.b16 %v396, %v395
    %v410 = vpack.c.b16 %v398, %v397
    %v411 = vpack.c.b16 %v400, %v399
    %v412 = vpack.c.b16 %v402, %v401
    %v413 = vpack.c.b16 %v404, %v403
    %v414 = vpack.c.b16 %v406, %v405
    %423 = vmatprep.subr.bf16.mxu0 0
    %424 = vmatpush1.bf16.msra.mxu0 %v407
    %425 = vmatprep.subr.bf16.mxu0 0
    %426 = vmatpush1.bf16.msra.mxu0 %v408
    %427 = vmatprep.subr.bf16.mxu0 0
    %428 = vmatpush1.bf16.msra.mxu0 %v409
    %429 = vmatprep.subr.bf16.mxu0 0
    %430 = vmatpush1.bf16.msra.mxu0 %v410
    %431 = vmatprep.subr.bf16.mxu0 0
    %432 = vmatpush1.bf16.msra.mxu0 %v411
    %433 = vmatprep.subr.bf16.mxu0 0
    %434 = vmatpush1.bf16.msra.mxu0 %v412
    %435 = vmatprep.subr.bf16.mxu0 0
    %436 = vmatpush1.bf16.msra.mxu0 %v413
    %437 = vmatprep.subr.bf16.mxu0 0
    %438 = vmatpush1.bf16.msra.mxu0 %v414
    %439 = vmatprep.subr.bf16.mxu0 0
    %440 = vmatpush1.bf16.msra.mxu0 0
    %441 = vmatprep.subr.bf16.mxu0 0
    %442 = vmatpush1.bf16.msra.mxu0 0
    %443 = vmatprep.subr.bf16.mxu0 0
    %444 = vmatpush1.bf16.msra.mxu0 0
    %445 = vmatprep.subr.bf16.mxu0 0
    %446 = vmatpush1.bf16.msra.mxu0 0
    %447 = vmatprep.subr.bf16.mxu0 0
    %448 = vmatpush1.bf16.msra.mxu0 0
    %449 = vmatprep.subr.bf16.mxu0 0
    %450 = vmatpush1.bf16.msra.mxu0 0
    %451 = vmatprep.subr.bf16.mxu0 0
    %452 = vmatpush1.bf16.msra.mxu0 0
    %453 = vmatprep.subr.bf16.mxu0 0
    %454 = vmatpush1.bf16.msra.mxu0 0
    %455 = vmatprep.mubr.bf16.mxu0 0
    %456 = vmatmul.mubr.bf16.gmra.mrb[0].mxu0 %v351
    %v457 = vpop.f32.mrb[0].mxu0
    %v458 = vadd.f32 %v373, %v457
    %v459 = vpop.f32.mrb[0].mxu0
    %v460 = vpop.f32.mrb[0].mxu0
    %v461 = vpop.f32.mrb[0].mxu0
    %462 = vdwg.mxu0
    %463 = vst.msk [vmem:[#allocation5] sm:$0xff] %vm57, %v458
    // Predicated region
    $region42: #{tpu_custom_call.1} parent=1 // pred_check
      _
    $region43: #{tpu_custom_call.1} parent=1 // pred_check_branch
      %465 = sbr.rel (0) target = $region45
    $region44: #{tpu_custom_call.1} parent=1 // pred_region
      %s467 = ssub.s32 128, 128
      %468 = vsyncadd [#allocation4], %s467
      %s470 = sshll.u32 [#allocation5], 4
      %s471 = int_to_ptr.vmem [resolvable:$true] %s470
      %473 = dma.vmem_to_hbm [thread:$0]  %s471, 128, %s9, [#allocation4]
    $region45: #{tpu_custom_call.1} parent=1 // pred_fallthru
      _
    // Predicated region
    $region46: #{tpu_custom_call.1} parent=1 // pred_check
      _
    $region47: #{tpu_custom_call.1} parent=1 // pred_check_branch
      %475 = sbr.rel (0) target = $region49
    $region48: #{tpu_custom_call.1} parent=1 // pred_region
      %476 = dma.done [#allocation4], 128
    $region49: #{tpu_custom_call.1} parent=1 // pred_fallthru
      _
    %477 = vsyncpa [#allocation3], 1
    %478 = vsyncpa [#allocation4], 1

</llo_original>
